<compile_context>
chip_gen: v7x
topology: tpu7x:2x2x1
jax: 0.10.0
libtpu: 0.0.40
codegen_flags: <defaults>
</compile_context>

<pallas_src>
import functools

import numpy as np
import jax
import jax.numpy as jnp
from jax.experimental import pallas as pl
from jax.experimental.pallas import tpu as pltpu


def _cdiv(a, b):
    return -(-a // b)


def _round_up(x, m):
    return _cdiv(x, m) * m


# ----------------------------- kernels --------------------------------------


def _proj_kernel_single_k(x_ref, w_ref, b_ref, o_ref, *, compute_dtype):
    """2-D grid: the whole K reduction fits in one tile; no accumulator."""
    h = jnp.dot(
        x_ref[...].astype(compute_dtype),
        w_ref[...],
        preferred_element_type=jnp.float32,
    ) + b_ref[...]
    o_ref[...] = (h * jax.nn.sigmoid(h)).astype(o_ref.dtype)


def _proj_kernel_acc_in_out(x_ref, w_ref, b_ref, o_ref, *, compute_dtype):
    """3-D grid, f32 output: accumulate directly into the resident output block."""
    k = pl.program_id(2)

    @pl.when(k == 0)
    def _():
        o_ref[...] = jnp.zeros_like(o_ref)

    o_ref[...] += jnp.dot(
        x_ref[...].astype(compute_dtype),
        w_ref[...],
        preferred_element_type=jnp.float32,
    )

    @pl.when(k == pl.num_programs(2) - 1)
    def _():
        h = o_ref[...] + b_ref[...]
        o_ref[...] = h * jax.nn.sigmoid(h)


def _proj_kernel_acc_scratch(x_ref, w_ref, b_ref, o_ref, acc_ref, *, compute_dtype):
    """3-D grid, narrow output dtype: f32 scratch accumulator, cast on finalize."""
    k = pl.program_id(2)

    @pl.when(k == 0)
    def _():
        acc_ref[...] = jnp.zeros_like(acc_ref)

    acc_ref[...] += jnp.dot(
        x_ref[...].astype(compute_dtype),
        w_ref[...],
        preferred_element_type=jnp.float32,
    )

    @pl.when(k == pl.num_programs(2) - 1)
    def _():
        h = acc_ref[...] + b_ref[...]
        o_ref[...] = (h * jax.nn.sigmoid(h)).astype(o_ref.dtype)


# --------------------------- tiling helpers ----------------------------------


def _vmem_capacity_bytes():
    try:
        info = pltpu.get_tpu_info()
        cap = int(getattr(info, "vmem_capacity_bytes", 0) or 0)
        if cap > 0:
            return cap
    except Exception:
        pass
    return 128 << 20  # conservative fallback


def _generation_defaults():
    """(tm_max, tn_max, tk_max, vmem_budget_bytes) per TPU generation."""
    cap = _vmem_capacity_bytes()
    if cap <= (96 << 20):
        # v7x-class: 64 MiB per TensorCore, ~3.2 TB/s HBM -> ridge reached with
        # moderate tiles; keep clear headroom below physical VMEM.
        return 768, 1024, 1024, min(int(cap * 0.80), 52 << 20)
    # v5e / v6e: 128 MiB VMEM. 1024x1024 is at/above the v5e ridge and the
    # "safe step" recommended for v6e.
    return 1024, 1024, 2048, min(int(cap * 0.85), 110 << 20)


def _fit_tile(dim, tile_max, align):
    """Aligned tile <= ~tile_max that splits `dim` with minimal padding waste."""
    if dim <= tile_max:
        return _round_up(dim, align)
    n_tiles = _cdiv(dim, tile_max)
    return _round_up(_cdiv(dim, n_tiles), align)


# ------------------------------ wrapper ---------------------------------------


@functools.partial(
    jax.jit, static_argnames=("tm", "tn", "tk", "compute_dtype", "out_dtype")
)
def embedding_projection(x, w, b, *, tm=None, tn=None, tk=None,
                         compute_dtype=jnp.bfloat16, out_dtype=None):
    """x: [M, K], w: [K, N], b: [N]  ->  silu(x @ w + b): [M, N]."""
    M, K = x.shape
    K2, N = w.shape
    assert K == K2 and b.shape == (N,)
    out_dtype = x.dtype if out_dtype is None else out_dtype
    out_is_f32 = np.dtype(out_dtype) == np.dtype(np.float32)

    tm_max, tn_max, tk_max, vmem_budget = _generation_defaults()
    tm = _fit_tile(M, tm_max if tm is None else tm, 8)
    tn = _fit_tile(N, tn_max if tn is None else tn, 128)
    tk = _fit_tile(K, tk_max if tk is None else tk, 128)

    Mp, Kp, Np = _round_up(M, tm), _round_up(K, tk), _round_up(N, tn)

    # Megacore: expose >= 2 parallel tiles when the problem would otherwise be a
    # single (M, N) tile, so both TensorCores get work.
    if (Mp // tm) * (Np // tn) == 1:
        if Np >= 256:
            tn = _round_up(_cdiv(Np, 2), 128)
            Np = _round_up(N, tn)
        elif Mp >= 16:
            tm = _round_up(_cdiv(Mp, 2), 8)
            Mp = _round_up(M, tm)

    grid_m, grid_n, grid_k = Mp // tm, Np // tn, Kp // tk

    # x: skip the wrapper-side cast/pad pass (a full extra HBM read+write of x)
    # when x needs no padding and is streamed at most twice; the in-kernel cast
    # hides under the MXU instead.
    needs_x_pad = (Mp, Kp) != (M, K)
    stream_x_raw = (x.dtype != compute_dtype) and (not needs_x_pad) and (grid_n <= 2)
    if stream_x_raw:
        xc = x
    else:
        xc = x.astype(compute_dtype)
        if needs_x_pad:
            xc = jnp.pad(xc, ((0, Mp - M), (0, Kp - K)))

    # W is re-read grid_m times -> always pre-cast to the MXU dtype.
    wc = w.astype(compute_dtype)
    if (Kp, Np) != (K, N):
        wc = jnp.pad(wc, ((0, Kp - K), (0, Np - N)))

    b2d = b.astype(jnp.float32).reshape(1, N)
    if Np != N:
        b2d = jnp.pad(b2d, ((0, 0), (0, Np - N)))

    x_bytes = np.dtype(xc.dtype).itemsize
    w_bytes = np.dtype(compute_dtype).itemsize
    o_bytes = np.dtype(out_dtype).itemsize

    # Real streaming traffic: x re-read per N tile, W re-read per M tile.
    cost = pl.CostEstimate(
        flops=2 * M * K * N,
        transcendentals=M * N,  # sigmoid exp
        bytes_accessed=(Mp * Kp * x_bytes * grid_n
                        + Kp * Np * w_bytes * grid_m
                        + Np * 4 * grid_m
                        + Mp * Np * o_bytes),
    )

    use_scratch = (grid_k > 1) and (not out_is_f32)
    work_bytes = 2 * (tm * tk * x_bytes + tk * tn * w_bytes + tn * 4
                      + tm * tn * o_bytes)
    if use_scratch:
        work_bytes += tm * tn * 4
    vmem_limit = int(min(max(int(work_bytes * 1.25), 32 << 20), vmem_budget))

    if grid_k == 1:
        kernel = functools.partial(_proj_kernel_single_k,
                                   compute_dtype=compute_dtype)
        grid = (grid_m, grid_n)
        in_specs = [
            pl.BlockSpec((tm, tk), lambda i, j: (i, 0)),   # x tile
            pl.BlockSpec((tk, tn), lambda i, j: (0, j)),   # W tile
            pl.BlockSpec((1, tn), lambda i, j: (0, j)),    # bias tile
        ]
        out_specs = pl.BlockSpec((tm, tn), lambda i, j: (i, j))
        scratch_shapes = []
        dim_sem = ("parallel", "parallel")
    else:
        grid = (grid_m, grid_n, grid_k)
        in_specs = [
            pl.BlockSpec((tm, tk), lambda i, j, k: (i, k)),   # x row/K tile
            pl.BlockSpec((tk, tn), lambda i, j, k: (k, j)),   # W K/N tile
            pl.BlockSpec((1, tn), lambda i, j, k: (0, j)),    # bias N tile
        ]
        out_specs = pl.BlockSpec((tm, tn), lambda i, j, k: (i, j))
        dim_sem = ("parallel", "parallel", "arbitrary")
        if out_is_f32:
            kernel = functools.partial(_proj_kernel_acc_in_out,
                                       compute_dtype=compute_dtype)
            scratch_shapes = []
        else:
            kernel = functools.partial(_proj_kernel_acc_scratch,
                                       compute_dtype=compute_dtype)
            scratch_shapes = [pltpu.VMEM((tm, tn), jnp.float32)]

    out_padded = pl.pallas_call(
        kernel,
        out_shape=jax.ShapeDtypeStruct((Mp, Np), out_dtype),
        grid_spec=pltpu.PrefetchScalarGridSpec(
            num_scalar_prefetch=0,
            grid=grid,
            in_specs=in_specs,
            out_specs=out_specs,
            scratch_shapes=scratch_shapes,
        ),
        compiler_params=pltpu.CompilerParams(
            dimension_semantics=dim_sem,
            vmem_limit_bytes=vmem_limit,
        ),
        cost_estimate=cost,
    )(xc, wc, b2d)

    if (Mp, Np) != (M, N):
        out_padded = out_padded[:M, :N]
    return out_padded


def _reference(x, w, b):
    h = x @ w + b
    return h * jax.nn.sigmoid(h)


if __name__ == "__main__":
    in_features = 32
    hidden_size = 64
    batch = 16  # rows of the embedding matrix

    key = jax.random.PRNGKey(0)
    kx, kw, kb = jax.random.split(key, 3)

    # Deterministic synthetic parameters (shapes from nn.Linear(in, hidden)).
    x = jax.random.normal(kx, (batch, in_features), dtype=jnp.float32)
    w = jax.random.normal(kw, (in_features, hidden_size), dtype=jnp.float32) * 0.05
    b = jax.random.normal(kb, (hidden_size,), dtype=jnp.float32) * 0.05

    out = embedding_projection(x, w, b)
    out = jax.block_until_ready(out)

    ref = _reference(x, w, b)
    assert out.shape == (batch, hidden_size)
    # bf16 matmul operands (f32 accumulation) -> looser tolerance vs f32 ref.
    assert jnp.allclose(out, ref, atol=2e-2, rtol=2e-2), "mismatch vs reference"

    print("KERNEL_OK")
</pallas_src>

<mosaic_0001>
module attributes {stable_mosaic.version = 11 : i64} {
  func.func @_proj_kernel_single_k(%arg0: i32, %arg1: i32, %arg2: memref<8x128xbf16, #tpu.memory_space<vmem>>, %arg3: memref<128x128xbf16, #tpu.memory_space<vmem>>, %arg4: memref<1x128xf32, #tpu.memory_space<vmem>>, %arg5: memref<8x128xf32, #tpu.memory_space<vmem>>) attributes {dimension_semantics = [#tpu.dimension_semantics<parallel>, #tpu.dimension_semantics<parallel>], iteration_bounds = array<i64: 2, 1>, scalar_prefetch = 0 : i64, scratch_operands = 0 : i64, tpu.core_type = #tpu.core_type<tc>, window_params = [{transform_indices = @transform_0, window_bounds = array<i64: 8, 128>}, {transform_indices = @transform_1, window_bounds = array<i64: 128, 128>}, {transform_indices = @transform_2, window_bounds = array<i64: 1, 128>}, {transform_indices = @transform_3, window_bounds = array<i64: 8, 128>}]} {
    %c0 = arith.constant 0 : index
    %c0_0 = arith.constant 0 : index
    %0 = vector.load %arg2[%c0, %c0_0] : memref<8x128xbf16, #tpu.memory_space<vmem>>, vector<8x128xbf16>
    %c0_1 = arith.constant 0 : index
    %c0_2 = arith.constant 0 : index
    %1 = vector.load %arg3[%c0_1, %c0_2] : memref<128x128xbf16, #tpu.memory_space<vmem>>, vector<128x128xbf16>
    %cst = arith.constant dense<0.000000e+00> : vector<8x128xf32>
    %2 = tpu.matmul %0, %1, %cst {dimension_numbers = #tpu.dot_dimension_numbers<[1], [0], [0], [1], [0, 0, 1, 1], [], []>} : vector<8x128xbf16>, vector<128x128xbf16>, vector<8x128xf32> -> vector<8x128xf32>
    %c0_3 = arith.constant 0 : index
    %c0_4 = arith.constant 0 : index
    %3 = vector.load %arg4[%c0_3, %c0_4] : memref<1x128xf32, #tpu.memory_space<vmem>>, vector<1x128xf32>
    %4 = vector.broadcast %3 : vector<1x128xf32> to vector<8x128xf32>
    %5 = arith.addf %2, %4 : vector<8x128xf32>
    %6 = arith.negf %5 : vector<8x128xf32>
    %7 = math.exp %6 : vector<8x128xf32>
    %cst_5 = arith.constant 1.000000e+00 : f32
    %8 = vector.broadcast %cst_5 : f32 to vector<8x128xf32>
    %9 = arith.addf %8, %7 : vector<8x128xf32>
    %10 = arith.divf %8, %9 : vector<8x128xf32>
    %11 = arith.mulf %5, %10 : vector<8x128xf32>
    %c0_6 = arith.constant 0 : index
    %c0_7 = arith.constant 0 : index
    %12 = vector.load %arg5[%c0_6, %c0_7] : memref<8x128xf32, #tpu.memory_space<vmem>>, vector<8x128xf32>
    tpu.vector_store %arg5[%c0_6, %c0_7], %11 {strides = array<i32>} : memref<8x128xf32, #tpu.memory_space<vmem>>, vector<8x128xf32>,
    return
  }
  func.func @transform_0(%arg0: i32, %arg1: i32) -> (i32, i32) {
    %c0_i32 = arith.constant 0 : i32
    %c0_i32_0 = arith.constant 0 : i32
    return %arg0, %c0_i32 : i32, i32
  }
  func.func @transform_1(%arg0: i32, %arg1: i32) -> (i32, i32) {
    %c0_i32 = arith.constant 0 : i32
    %c0_i32_0 = arith.constant 0 : i32
    return %c0_i32, %arg1 : i32, i32
  }
  func.func @transform_2(%arg0: i32, %arg1: i32) -> (i32, i32) {
    %c0_i32 = arith.constant 0 : i32
    %c0_i32_0 = arith.constant 0 : i32
    return %c0_i32, %arg1 : i32, i32
  }
  func.func @transform_3(%arg0: i32, %arg1: i32) -> (i32, i32) {
    %c0_i32 = arith.constant 0 : i32
    return %arg0, %arg1 : i32, i32
  }
}

</mosaic_0001>

<llo_original>
// kernel: embedding_projection.1
$region0: #{embedding_projection.1}
  #allocation0 [shape = 'u32[]', space=smem, size = 0x4, offset = 0x4, fixed_abs, tag = 'smem constant byte address 0x4 - core index']
  #allocation1 [shape = 'u32[144,128]{1,0:T(1,128)}', space=vmem, size = 0x12000, scoped, tag = 'internal scratch']
  %s0 = inlined_call_operand.vmem [shape: bf16[16,128], index: 0, kind: input, shape index: {}]
  %s1 = inlined_call_operand.vmem [shape: bf16[128,128], index: 1, kind: input, shape index: {}]
  %s2 = inlined_call_operand.vmem [shape: f32[1,128], index: 2, kind: input, shape index: {}]
  %s3 = inlined_call_operand.hbm [shape: f32[16,128], index: 3, kind: output, shape index: {}]
  %s4 = sld [smem:[#allocation0]]
  $region45: #{embedding_projection.1} parent=0
    _
  %s6 = ssub.s32 1, %s4
  %s7 = scalar_select 0, %s6, %s4
  $region1: #{embedding_projection.1} parent=0
    #allocation2 [shape = 'u8[8192]{0}', space=vmem, size = 0x2000, scoped, tag = 'output window, operand 0']
    #allocation3 [shape = 's32[2]{0}', space=sflag, size = 0x8, scoped, tag = 'scoped memory for embedding_projection.1']
    %8 = vsyncpa [#allocation3], 0
    %s9 = scalar_lea.sflag [#allocation3], 1
    %10 = vsyncpa %s9, 0
    loop: start=0, step=1, limit=4
    $region2: #{embedding_projection.1} parent=1 // loop_pre_header
      _
    $region3: #{embedding_projection.1} parent=1 // loop_header
      %s12 = sphi 0, %s16
      %p13 = scmp.ge.s32.totalorder %s12, 4
      %s19 = sphi 0, %s31
      %s20 = sphi 0, %s27
      %s21 = sphi 0, %s19
      %s22 = sphi 0, %s20
      %s23 = sphi 0, %s21
      %s24 = sphi 0, %s22
      %s34 = sphi 0, %s36
      %s37 = sphi 0, %s34
      %s38 = sphi 0, %s37
      %s54 = sphi 0, %s38
      %s60 = sphi 0, %s62
      %s63 = sphi 0, %s60
      %s64 = sphi 0, %s63
      %s80 = sphi 0, %s64
      %s86 = sphi 0, %s88
      %s89 = sphi 0, %s86
      %s90 = sphi 0, %s89
      %s106 = sphi 0, %s90
      %s114 = sphi 0, %s116
      %s117 = sphi 0, %s114
      %s118 = sphi 0, %s117
      %s134 = sphi 0, %s118
    $region4: #{embedding_projection.1} parent=1 // loop_header_branch
      %15 = sbr.rel (%p13) target = $region8
    $region5: #{embedding_projection.1} parent=1 // loop_body
      %s17 = ssub.s32 %s12, 1
      %s18 = ssub.s32 %s12, 2
      %s25 = sadd.s32 1, %s20
      %p26 = scmp.ge.s32.totalorder %s25, 1
      %s27 = scalar_select %p26, 0, %s25
      %s28 = sadd.s32 1, %s19
      %s29 = scalar_select %p26, %s28, %s19
      %p30 = scmp.ge.s32.totalorder %s29, 2
      %s31 = scalar_select %p30, 0, %s29
      %s32 = ssub.s32 %s19, %s31
      %p33 = scmp.eq.s32.totalorder %s32, 0
      %s35 = sadd.s32 %s34, 1
      %s36 = scalar_select %p33, %s34, %s35
      %p39 = pneg %p33
      %p40 = scmp.eq.s32.totalorder %s12, 1
      %p41 = por %p39, %p40
      %p42 = scmp.ne.s32.totalorder %s34, %s37
      %p43 = scmp.eq.s32.totalorder %s12, 0
      %p44 = por %p42, %p43
      %p45 = scmp.ne.s32.totalorder %s34, %s37
      %p46 = scmp.eq.s32.totalorder %s17, 1
      %p47 = por %p45, %p46
      %p48 = scmp.ne.s32.totalorder %s37, %s38
      %p49 = scmp.eq.s32.totalorder %s17, 0
      %p50 = por %p48, %p49
      %p51 = scmp.ne.s32.totalorder %s37, %s38
      %p52 = scmp.eq.s32.totalorder %s18, 1
      %p53 = por %p51, %p52
      %p55 = scmp.ne.s32.totalorder %s38, %s54
      %p56 = scmp.eq.s32.totalorder %s18, 0
      %p57 = por %p55, %p56
      %s58 = ssub.s32 %s20, %s27
      %p59 = scmp.eq.s32.totalorder %s58, 0
      %s61 = sadd.s32 %s60, 1
      %s62 = scalar_select %p59, %s60, %s61
      %p65 = pneg %p59
      %p66 = scmp.eq.s32.totalorder %s12, 1
      %p67 = por %p65, %p66
      %p68 = scmp.ne.s32.totalorder %s60, %s63
      %p69 = scmp.eq.s32.totalorder %s12, 0
      %p70 = por %p68, %p69
      %p71 = scmp.ne.s32.totalorder %s60, %s63
      %p72 = scmp.eq.s32.totalorder %s17, 1
      %p73 = por %p71, %p72
      %p74 = scmp.ne.s32.totalorder %s63, %s64
      %p75 = scmp.eq.s32.totalorder %s17, 0
      %p76 = por %p74, %p75
      %p77 = scmp.ne.s32.totalorder %s63, %s64
      %p78 = scmp.eq.s32.totalorder %s18, 1
      %p79 = por %p77, %p78
      %p81 = scmp.ne.s32.totalorder %s64, %s80
      %p82 = scmp.eq.s32.totalorder %s18, 0
      %p83 = por %p81, %p82
      %s84 = ssub.s32 %s20, %s27
      %p85 = scmp.eq.s32.totalorder %s84, 0
      %s87 = sadd.s32 %s86, 1
      %s88 = scalar_select %p85, %s86, %s87
      %p91 = pneg %p85
      %p92 = scmp.eq.s32.totalorder %s12, 1
      %p93 = por %p91, %p92
      %p94 = scmp.ne.s32.totalorder %s86, %s89
      %p95 = scmp.eq.s32.totalorder %s12, 0
      %p96 = por %p94, %p95
      %p97 = scmp.ne.s32.totalorder %s86, %s89
      %p98 = scmp.eq.s32.totalorder %s17, 1
      %p99 = por %p97, %p98
      %p100 = scmp.ne.s32.totalorder %s89, %s90
      %p101 = scmp.eq.s32.totalorder %s17, 0
      %p102 = por %p100, %p101
      %p103 = scmp.ne.s32.totalorder %s89, %s90
      %p104 = scmp.eq.s32.totalorder %s18, 1
      %p105 = por %p103, %p104
      %p107 = scmp.ne.s32.totalorder %s90, %s106
      %p108 = scmp.eq.s32.totalorder %s18, 0
      %p109 = por %p107, %p108
      %s110 = ssub.s32 %s19, %s31
      %s111 = ssub.s32 %s20, %s27
      %s112 = sor.u32 %s110, %s111
      %p113 = scmp.eq.s32.totalorder %s112, 0
      %s115 = sadd.s32 %s114, 1
      %s116 = scalar_select %p113, %s114, %s115
      %p119 = pneg %p113
      %p120 = scmp.eq.s32.totalorder %s12, 1
      %p121 = por %p119, %p120
      %p122 = scmp.ne.s32.totalorder %s114, %s117
      %p123 = scmp.eq.s32.totalorder %s12, 0
      %p124 = por %p122, %p123
      %p125 = scmp.ne.s32.totalorder %s114, %s117
      %p126 = scmp.eq.s32.totalorder %s17, 1
      %p127 = por %p125, %p126
      %p128 = scmp.ne.s32.totalorder %s117, %s118
      %p129 = scmp.eq.s32.totalorder %s17, 0
      %p130 = por %p128, %p129
      %p131 = scmp.ne.s32.totalorder %s117, %s118
      %p132 = scmp.eq.s32.totalorder %s18, 1
      %p133 = por %p131, %p132
      %p135 = scmp.ne.s32.totalorder %s118, %s134
      %p136 = scmp.eq.s32.totalorder %s18, 0
      %p137 = por %p135, %p136
      %p138 = scmp.le.s32.totalorder 1, %s12
      %p139 = scmp.lt.s32.totalorder %s12, 3
      %p140 = pnand %p138, %p139
      %p141 = pneg %p140
      // Predicated region
      $region9: #{embedding_projection.1} parent=5 // pred_check
        _
      $region10: #{embedding_projection.1} parent=5 // pred_check_branch
        %143 = sbr.rel (%p140) target = $region12
      $region11: #{embedding_projection.1} parent=5 // pred_region
        %s144 = ssub.s32 %s12, 1
        // Predicated region
        $region13: #{embedding_projection.1} parent=11 // pred_check
          %p145 = pneg %p76
        $region14: #{embedding_projection.1} parent=11 // pred_check_branch
          %147 = sbr.rel (%p145) target = $region16
        $region15: #{embedding_projection.1} parent=11 // pred_region
          %p148 = scmp.lt.s32.totalorder %s22, 0
          %s149 = scalar_select %p148, %s22, 0
          %s150 = smul.addr %s149, 4
          %s151 = scalar_lea.vmem %s1, %s150
        $region16: #{embedding_projection.1} parent=11 // pred_fallthru
          _
        // Predicated region
        $region17: #{embedding_projection.1} parent=11 // pred_check
          %p152 = pneg %p102
        $region18: #{embedding_projection.1} parent=11 // pred_check_branch
          %154 = sbr.rel (%p152) target = $region20
        $region19: #{embedding_projection.1} parent=11 // pred_region
          %p155 = scmp.lt.s32.totalorder %s22, 0
          %s156 = scalar_select %p155, %s22, 0
          %s157 = scalar_lea.vmem %s2, %s156
        $region20: #{embedding_projection.1} parent=11 // pred_fallthru
          _
      $region12: #{embedding_projection.1} parent=5 // pred_fallthru
        _
      %p158 = scmp.lt.s32.totalorder %s12, 2
      // Predicated region
      $region21: #{embedding_projection.1} parent=5 // pred_check
        %p159 = pneg %p158
      $region22: #{embedding_projection.1} parent=5 // pred_check_branch
        %161 = sbr.rel (%p159) target = $region24
      $region23: #{embedding_projection.1} parent=5 // pred_region
        // Predicated region
        $region25: #{embedding_projection.1} parent=23 // pred_check
          %p162 = pneg %p44
        $region26: #{embedding_projection.1} parent=23 // pred_check_branch
          %164 = sbr.rel (%p162) target = $region28
        $region27: #{embedding_projection.1} parent=23 // pred_region
          %p165 = scmp.lt.s32.totalorder %s19, 1
          %s166 = scalar_select %p165, %s19, 1
          %s167 = smul.addr %s166, 4
          %s168 = scalar_lea.vmem %s0, %s167
        $region28: #{embedding_projection.1} parent=23 // pred_fallthru
          _
      $region24: #{embedding_projection.1} parent=5 // pred_fallthru
        _
      %p169 = scmp.le.s32.totalorder 1, %s12
      %p170 = scmp.lt.s32.totalorder %s12, 3
      %p171 = pnand %p169, %p170
      %p172 = pneg %p171
      // Predicated region
      $region29: #{embedding_projection.1} parent=5 // pred_check
        _
      $region30: #{embedding_projection.1} parent=5 // pred_check_branch
        %174 = sbr.rel (%p171) target = $region32
      $region31: #{embedding_projection.1} parent=5 // pred_region
        %s175 = ssub.s32 %s12, 1
        %p176 = scmp.lt.s32.totalorder %s21, 1
        %s177 = scalar_select %p176, %s21, 1
        %s178 = smul.addr %s177, 4
        %s179 = scalar_lea.vmem %s0, %s178
        %p180 = pneg %p50
        %p181 = pneg %p47
        %p182 = scmp.lt.s32.totalorder %s22, 0
        %s183 = scalar_select %p182, %s22, 0
        %s184 = smul.addr %s183, 4
        %s185 = scalar_lea.vmem %s1, %s184
        %p186 = pneg %p76
        %p187 = pneg %p73
        %p188 = scmp.lt.s32.totalorder %s22, 0
        %s189 = scalar_select %p188, %s22, 0
        %s190 = scalar_lea.vmem %s2, %s189
        %p191 = pneg %p102
        %p192 = pneg %p99
        %p193 = pneg %p130
        %p194 = pneg %p127
        %s195 = sand.u32 %s117, 1
        %s196 = scalar_lea.sflag [#allocation3], %s195
        %s197 = sand.u32 %s117, 1
        %s198 = smul.addr %s197, 8
        %s199 = scalar_lea.vmem [#allocation2], %s198
        %p200 = scmp.lt.s32.totalorder %s21, 1
        %s201 = scalar_select %p200, %s21, 1
        %s202 = smul.addr %s201, 4
        %s203 = scalar_lea.vmem %s0, %s202
        %p204 = scmp.lt.s32.totalorder %s22, 0
        %s205 = scalar_select %p204, %s22, 0
        %s206 = smul.addr %s205, 4
        %s207 = scalar_lea.vmem %s1, %s206
        %p208 = scmp.lt.s32.totalorder %s22, 0
        %s209 = scalar_select %p208, %s22, 0
        %s210 = scalar_lea.vmem %s2, %s209
        %v212 = vld [vmem:[%s203] sm:$0xf]
        %v213 = vld [vmem:[%s207] sm:$0xf]
        %v214 = vld [vmem:[%s207 + $0x4] sm:$0xf]
        %v215 = vld [vmem:[%s207 + $0x8] sm:$0xf]
        %v216 = vld [vmem:[%s207 + $0xc] sm:$0xf]
        %v217 = vld [vmem:[%s207 + $0x10] sm:$0xf]
        %v218 = vld [vmem:[%s207 + $0x14] sm:$0xf]
        %v219 = vld [vmem:[%s207 + $0x18] sm:$0xf]
        %v220 = vld [vmem:[%s207 + $0x1c] sm:$0xf]
        %v221 = vld [vmem:[%s207 + $0x20] sm:$0xf]
        %v222 = vld [vmem:[%s207 + $0x24] sm:$0xf]
        %v223 = vld [vmem:[%s207 + $0x28] sm:$0xf]
        %v224 = vld [vmem:[%s207 + $0x2c] sm:$0xf]
        %v225 = vld [vmem:[%s207 + $0x30] sm:$0xf]
        %v226 = vld [vmem:[%s207 + $0x34] sm:$0xf]
        %v227 = vld [vmem:[%s207 + $0x38] sm:$0xf]
        %v228 = vld [vmem:[%s207 + $0x3c] sm:$0xf]
        %v229 = vld [vmem:[%s210] sm:$0x1]
        %v231 = vlaneseq
        %v232 = vshrl.u32 %v231, 7
        %v233 = vsub.s32 0, %v232
        %v234 = vrot.slane %v229, %v233
        %v252 = vunpack.c.l.b16 %v213
        %v253 = vunpack.c.l.b16 %v214
        %v254 = vunpack.c.l.b16 %v215
        %v255 = vunpack.c.l.b16 %v216
        %v256 = vunpack.c.l.b16 %v217
        %v257 = vunpack.c.l.b16 %v218
        %v258 = vunpack.c.l.b16 %v219
        %v259 = vunpack.c.l.b16 %v220
        %v260 = vunpack.c.l.b16 %v221
        %v261 = vunpack.c.l.b16 %v222
        %v262 = vunpack.c.l.b16 %v223
        %v263 = vunpack.c.l.b16 %v224
        %v264 = vunpack.c.l.b16 %v225
        %v265 = vunpack.c.l.b16 %v226
        %v266 = vunpack.c.l.b16 %v227
        %v267 = vunpack.c.l.b16 %v228
        %v268 = vpack.c.b16 %v253, %v252
        %v269 = vpack.c.b16 %v255, %v254
        %v270 = vpack.c.b16 %v257, %v256
        %v271 = vpack.c.b16 %v259, %v258
        %v272 = vpack.c.b16 %v261, %v260
        %v273 = vpack.c.b16 %v263, %v262
        %v274 = vpack.c.b16 %v265, %v264
        %v275 = vpack.c.b16 %v267, %v266
        %284 = vmatprep.subr.bf16.mxu0 0
        %285 = vmatpush1.bf16.msra.mxu0 %v268
        %286 = vmatprep.subr.bf16.mxu0 0
        %287 = vmatpush1.bf16.msra.mxu0 %v269
        %288 = vmatprep.subr.bf16.mxu0 0
        %289 = vmatpush1.bf16.msra.mxu0 %v270
        %290 = vmatprep.subr.bf16.mxu0 0
        %291 = vmatpush1.bf16.msra.mxu0 %v271
        %292 = vmatprep.subr.bf16.mxu0 0
        %293 = vmatpush1.bf16.msra.mxu0 %v272
        %294 = vmatprep.subr.bf16.mxu0 0
        %295 = vmatpush1.bf16.msra.mxu0 %v273
        %296 = vmatprep.subr.bf16.mxu0 0
        %297 = vmatpush1.bf16.msra.mxu0 %v274
        %298 = vmatprep.subr.bf16.mxu0 0
        %299 = vmatpush1.bf16.msra.mxu0 %v275
        %300 = vmatprep.subr.bf16.mxu0 0
        %301 = vmatpush1.bf16.msra.mxu0 0
        %302 = vmatprep.subr.bf16.mxu0 0
        %303 = vmatpush1.bf16.msra.mxu0 0
        %304 = vmatprep.subr.bf16.mxu0 0
        %305 = vmatpush1.bf16.msra.mxu0 0
        %306 = vmatprep.subr.bf16.mxu0 0
        %307 = vmatpush1.bf16.msra.mxu0 0
        %308 = vmatprep.subr.bf16.mxu0 0
        %309 = vmatpush1.bf16.msra.mxu0 0
        %310 = vmatprep.subr.bf16.mxu0 0
        %311 = vmatpush1.bf16.msra.mxu0 0
        %312 = vmatprep.subr.bf16.mxu0 0
        %313 = vmatpush1.bf16.msra.mxu0 0
        %314 = vmatprep.subr.bf16.mxu0 0
        %315 = vmatpush1.bf16.msra.mxu0 0
        %316 = vmatprep.mubr.bf16.mxu0 0
        %317 = vmatmul.mubr.bf16.gmra.mrb[0].mxu0 %v212
        %v318 = vpop.f32.mrb[0].mxu0
        %v319 = vadd.f32 %v234, %v318
        %v320 = vpop.f32.mrb[0].mxu0
        %v321 = vpop.f32.mrb[0].mxu0
        %v322 = vpop.f32.mrb[0].mxu0
        %323 = vdwg.mxu0
        %v324 = vxor.u32 %v319, 2147483648
        %v325 = vmul.f32 %v324, 1.442695
        %v326 = vpow.pop %v325
        %v327 = vadd.f32 %v326, 1.0
        %v328 = vrcp.pop %v327
        %v329 = vmul.f32 1.0, %v328
        %v330 = vmul.f32 %v319, %v329
        %331 = vst [vmem:[%s199] sm:$0xff] %v330
        %s332 = sand.u32 %s117, 1
        %s333 = scalar_lea.sflag [#allocation3], %s332
        %s334 = sand.u32 %s117, 1
        %s335 = smul.addr %s334, 8
        %s336 = scalar_lea.vmem [#allocation2], %s335
        // Predicated region
        $region33: #{embedding_projection.1} parent=31 // pred_check
          %p337 = pneg %p127
        $region34: #{embedding_projection.1} parent=31 // pred_check_branch
          %339 = sbr.rel (%p337) target = $region36
        $region35: #{embedding_projection.1} parent=31 // pred_region
          %s341 = ssub.s32 128, 128
          %342 = vsyncadd %s333, %s341
          %s343 = sadd.s32 %s22, %s21
          %s344 = smul.addr %s343, 128
          %s345 = scalar_lea.hbm %s3, %s344
          %s347 = sshll.u32 %s336, 4
          %s348 = int_to_ptr.vmem [resolvable:$true] %s347
          %350 = dma.vmem_to_hbm [thread:$0]  %s348, 128, %s345, %s333
        $region36: #{embedding_projection.1} parent=31 // pred_fallthru
          _
      $region32: #{embedding_projection.1} parent=5 // pred_fallthru
        _
      %p351 = scmp.le.s32.totalorder 2, %s12
      // Predicated region
      $region37: #{embedding_projection.1} parent=5 // pred_check
        %p352 = pneg %p351
      $region38: #{embedding_projection.1} parent=5 // pred_check_branch
        %354 = sbr.rel (%p352) target = $region40
      $region39: #{embedding_projection.1} parent=5 // pred_region
        %s355 = ssub.s32 %s12, 2
        // Predicated region
        $region41: #{embedding_projection.1} parent=39 // pred_check
          %p356 = pneg %p133
        $region42: #{embedding_projection.1} parent=39 // pred_check_branch
          %358 = sbr.rel (%p356) target = $region44
        $region43: #{embedding_projection.1} parent=39 // pred_region
          %s359 = sand.u32 %s118, 1
          %s360 = scalar_lea.sflag [#allocation3], %s359
          %s361 = sand.u32 %s118, 1
          %s362 = smul.addr %s361, 8
          %s363 = scalar_lea.vmem [#allocation2], %s362
          %364 = dma.done %s360, 128
        $region44: #{embedding_projection.1} parent=39 // pred_fallthru
          _
      $region40: #{embedding_projection.1} parent=5 // pred_fallthru
        _
    $region6: #{embedding_projection.1} parent=1 // loop_footer
      %s16 = sadd.s32 1, %s12
    $region7: #{embedding_projection.1} parent=1 // loop_footer_branch
      %11 = sbr.rel target = $region3
    $region8: #{embedding_projection.1} parent=1 // loop_exit
      _
    %365 = vsyncpa [#allocation3], 1
    %s366 = scalar_lea.sflag [#allocation3], 1
    %367 = vsyncpa %s366, 1

</llo_original>
